<compile_context>
chip_gen: v6e
topology: v6e:2x2x1
jax: 0.10.0
libtpu: 0.0.40
codegen_flags: <defaults>
</compile_context>

<pallas_src>
import functools
from typing import List

import jax
import jax.numpy as jnp
import numpy as np
from jax.experimental import pallas as pl
from jax.experimental.pallas import tpu as pltpu

_SUBLANE = 8     # f32 sublane multiple
_LANE = 128      # lane multiple


# ------------------------------ Pallas kernel ------------------------------

def _fused_tcn_kernel(x_ref, w_ref, b_ref, o_ref, *, kernel_sizes):
    """Whole TCN stack, whole batch, one invocation.

      x_ref : (Cp, N)            VMEM, N = B * Tp, Tp % 128 == 0
      w_ref : (sum(K), Cp, Cp)   VMEM, packed tap matrices W[l][dt] = w[:, :, dt]
      b_ref : (L, Cp, 1)         VMEM, packed biases
      o_ref : (Cp, N)            VMEM, lane-dense output
    """
    n_layers = len(kernel_sizes)
    n_lanes = x_ref.shape[-1]
    h = x_ref[...]                                   # (Cp, N) f32
    tap = 0
    for li, k in enumerate(kernel_sizes):
        # Tap 0: no rotate needed.
        acc = jnp.dot(w_ref[tap], h, preferred_element_type=jnp.float32)
        for dt in range(1, k):
            # roll by (N - dt) == roll by -dt: column t sees h[:, t + dt].
            h_dt = pltpu.roll(h, shift=n_lanes - dt, axis=1)
            acc = acc + jnp.dot(w_ref[tap + dt], h_dt,
                                preferred_element_type=jnp.float32)
        tap += k
        acc = acc + b_ref[li]                        # (Cp, 1) broadcast
        if li < n_layers - 1:                        # last_acti=False
            acc = jnp.maximum(acc, 0.0)
        h = acc
    o_ref[...] = h.astype(o_ref.dtype)


# ------------------------- parameters (JAX glue) ----------------------------

def init_tcn_params(key, channels: int, kernel_sizes: List[int]):
    """Deterministic Conv1d weights/biases for the TCN stack (C -> C)."""
    params = []
    for k in kernel_sizes:
        key, kw, kb = jax.random.split(key, 3)
        w = 0.1 * jax.random.normal(kw, (channels, channels, k), jnp.float32)
        b = 0.01 * jax.random.normal(kb, (channels,), jnp.float32)
        params.append((w, b))
    return params


def prepare_tcn_params(params, kernel_sizes):
    """Hoisted ONCE at init.

    Conv1d (Cout, Cin, K) -> per-tap matrices zero-padded to (Cp, Cp), packed
    into a single slab (sum_K, Cp, Cp); biases -> single slab (L, Cp, 1).
    Padded rows/cols are zero, so padded channels stay exactly zero end-to-end.
    """
    C = params[0][0].shape[0]
    Cp = int(np.ceil(C / _SUBLANE) * _SUBLANE)
    taps, biases = [], []
    for (w, b) in params:
        Cout, Cin, K = w.shape
        for dt in range(K):
            wt = jnp.zeros((Cp, Cp), jnp.float32).at[:Cout, :Cin].set(w[:, :, dt])
            taps.append(wt)
        bp = jnp.zeros((Cp, 1), jnp.float32).at[:Cout, :].set(b[:, None])
        biases.append(bp)
    w_slab = jnp.stack(taps, axis=0)       # (sum_K, Cp, Cp)
    b_slab = jnp.stack(biases, axis=0)     # (L, Cp, 1)
    return (tuple(kernel_sizes), Cp, C, w_slab, b_slab)


def tcn_forward_fused(x_in, prepared):
    """Fused TCN stack. x_in: (B, Cin, T_in) f32. Returns (B, Cout, T_out)."""
    kernel_sizes, Cp, C, w_slab, b_slab = prepared
    B, Cin, T_in = x_in.shape
    T_out = T_in - sum(k - 1 for k in kernel_sizes)
    assert T_out >= 1
    # Per-batch lane stride padded to a lane multiple -> lane-dense datapath
    # (N = B*Tp >= 256 here, unmasked vst; batch blocks start on vreg bounds).
    Tp = int(np.ceil(T_in / _LANE) * _LANE)
    N = B * Tp

    # Wrapper-side layout plumbing: (B, Cin, T_in) -> (Cp, B*Tp), zero-padded.
    xt = jnp.transpose(x_in, (1, 0, 2))                       # (Cin, B, T_in)
    xt = jnp.pad(xt, ((0, Cp - Cin), (0, 0), (0, Tp - T_in)))  # (Cp, B, Tp)
    xp = xt.reshape(Cp, N)

    kern = functools.partial(_fused_tcn_kernel,
                             kernel_sizes=tuple(kernel_sizes))
    out2d = pl.pallas_call(
        kern,
        out_shape=jax.ShapeDtypeStruct((Cp, N), x_in.dtype),
        # Whole (tiny) problem lives in VMEM; single step, no grid.
        in_specs=[pl.BlockSpec(memory_space=pltpu.MemorySpace.VMEM)] * 3,
        out_specs=pl.BlockSpec(memory_space=pltpu.MemorySpace.VMEM),
    )(xp, w_slab, b_slab)

    # Lane-dense (Cp, B*Tp) -> NCW (B, Cout, T_out): layout plumbing only.
    out = out2d.reshape(Cp, B, Tp)[:C, :, :T_out]              # (C, B, T_out)
    return jnp.transpose(out, (1, 0, 2))


def recurrent_tcn_forward(inputs, prepared, input_len: int):
    """Mirror of RecurrentTCNModule.forward (functional)."""
    x, last_outs = inputs
    input_x = x[..., -input_len:]
    out = tcn_forward_fused(input_x, prepared)
    detach_out = jax.lax.stop_gradient(out)          # == torch .detach()
    x_new = jnp.concatenate([x, detach_out], axis=-1)
    new_last_outs = (list(last_outs) + [out]) if last_outs is not None else [out]
    return x_new, new_last_outs


# ------------------------------ reference ----------------------------------

def _ref_conv1d(x, w, b, apply_relu):
    y = jax.lax.conv_general_dilated(
        x, w, window_strides=(1,), padding="VALID",
        dimension_numbers=("NCH", "OIH", "NCH"))
    y = y + b[None, :, None]
    if apply_relu:
        y = jnp.maximum(y, 0.0)
    return y


def _ref_tcn(x, params):
    n = len(params)
    for i, (w, b) in enumerate(params):
        x = _ref_conv1d(x, w, b, apply_relu=(i < n - 1))
    return x


# --------------------------------- main ------------------------------------

if __name__ == "__main__":
    # Small shapes consistent with the module:
    B, C, T = 2, 4, 24
    INPUT_LEN = 16
    KERNEL_SIZES = [5, 5]
    OUT_LEN = INPUT_LEN - sum(k - 1 for k in KERNEL_SIZES)   # = 8

    key = jax.random.PRNGKey(0)
    key_x, key_p = jax.random.split(key)
    x = jax.random.normal(key_x, (B, C, T), jnp.float32)
    params = init_tcn_params(key_p, C, KERNEL_SIZES)
    prepared = prepare_tcn_params(params, KERNEL_SIZES)      # hoisted to init
    last_outs = None

    x_new, new_last_outs = recurrent_tcn_forward((x, last_outs), prepared,
                                                 INPUT_LEN)
    x_new = jax.block_until_ready(x_new)
    out = jax.block_until_ready(new_last_outs[-1])

    # shape checks
    assert out.shape == (B, C, OUT_LEN), out.shape
    assert x_new.shape == (B, C, T + OUT_LEN), x_new.shape
    assert len(new_last_outs) == 1

    # numerical check vs pure-JAX reference of the same TCN
    ref_out = _ref_tcn(x[..., -INPUT_LEN:], params)
    np.testing.assert_allclose(np.asarray(out), np.asarray(ref_out),
                               rtol=1e-5, atol=1e-5)
    np.testing.assert_allclose(np.asarray(x_new[..., :T]), np.asarray(x),
                               rtol=0, atol=0)
    np.testing.assert_allclose(np.asarray(x_new[..., T:]), np.asarray(ref_out),
                               rtol=1e-5, atol=1e-5)

    print("KERNEL_OK")
</pallas_src>

<mosaic_0001>
module attributes {stable_mosaic.version = 11 : i64} {
  func.func @_fused_tcn_kernel(%arg0: memref<8x256xf32, #tpu.memory_space<vmem>>, %arg1: memref<10x8x8xf32, #tpu.memory_space<vmem>>, %arg2: memref<2x8x1xf32, #tpu.memory_space<vmem>>, %arg3: memref<8x256xf32, #tpu.memory_space<vmem>>) attributes {dimension_semantics = [], scalar_prefetch = 0 : i64, scratch_operands = 0 : i64, tpu.core_type = #tpu.core_type<tc>} {
    %c0 = arith.constant 0 : index
    %c0_0 = arith.constant 0 : index
    %0 = vector.load %arg0[%c0, %c0_0] : memref<8x256xf32, #tpu.memory_space<vmem>>, vector<8x256xf32>
    %c0_1 = arith.constant 0 : index
    %c0_2 = arith.constant 0 : index
    %c0_3 = arith.constant 0 : index
    %1 = vector.load %arg1[%c0_1, %c0_2, %c0_3] : memref<10x8x8xf32, #tpu.memory_space<vmem>>, vector<1x8x8xf32>
    %2 = vector.shape_cast %1 : vector<1x8x8xf32> to vector<8x8xf32>
    %cst = arith.constant dense<0.000000e+00> : vector<8x256xf32>
    %3 = tpu.matmul %2, %0, %cst {dimension_numbers = #tpu.dot_dimension_numbers<[1], [0], [0], [1], [0, 0, 1, 1], [], []>} : vector<8x8xf32>, vector<8x256xf32>, vector<8x256xf32> -> vector<8x256xf32>
    %c255_i32 = arith.constant 255 : i32
    %4 = tpu.dynamic_rotate %0 by %c255_i32 dim 1 : vector<8x256xf32>, i32 -> vector<8x256xf32>
    %c1 = arith.constant 1 : index
    %c0_4 = arith.constant 0 : index
    %c0_5 = arith.constant 0 : index
    %5 = vector.load %arg1[%c1, %c0_4, %c0_5] : memref<10x8x8xf32, #tpu.memory_space<vmem>>, vector<1x8x8xf32>
    %6 = vector.shape_cast %5 : vector<1x8x8xf32> to vector<8x8xf32>
    %cst_6 = arith.constant dense<0.000000e+00> : vector<8x256xf32>
    %7 = tpu.matmul %6, %4, %cst_6 {dimension_numbers = #tpu.dot_dimension_numbers<[1], [0], [0], [1], [0, 0, 1, 1], [], []>} : vector<8x8xf32>, vector<8x256xf32>, vector<8x256xf32> -> vector<8x256xf32>
    %8 = arith.addf %3, %7 : vector<8x256xf32>
    %c254_i32 = arith.constant 254 : i32
    %9 = tpu.dynamic_rotate %0 by %c254_i32 dim 1 : vector<8x256xf32>, i32 -> vector<8x256xf32>
    %c2 = arith.constant 2 : index
    %c0_7 = arith.constant 0 : index
    %c0_8 = arith.constant 0 : index
    %10 = vector.load %arg1[%c2, %c0_7, %c0_8] : memref<10x8x8xf32, #tpu.memory_space<vmem>>, vector<1x8x8xf32>
    %11 = vector.shape_cast %10 : vector<1x8x8xf32> to vector<8x8xf32>
    %cst_9 = arith.constant dense<0.000000e+00> : vector<8x256xf32>
    %12 = tpu.matmul %11, %9, %cst_9 {dimension_numbers = #tpu.dot_dimension_numbers<[1], [0], [0], [1], [0, 0, 1, 1], [], []>} : vector<8x8xf32>, vector<8x256xf32>, vector<8x256xf32> -> vector<8x256xf32>
    %13 = arith.addf %8, %12 : vector<8x256xf32>
    %c253_i32 = arith.constant 253 : i32
    %14 = tpu.dynamic_rotate %0 by %c253_i32 dim 1 : vector<8x256xf32>, i32 -> vector<8x256xf32>
    %c3 = arith.constant 3 : index
    %c0_10 = arith.constant 0 : index
    %c0_11 = arith.constant 0 : index
    %15 = vector.load %arg1[%c3, %c0_10, %c0_11] : memref<10x8x8xf32, #tpu.memory_space<vmem>>, vector<1x8x8xf32>
    %16 = vector.shape_cast %15 : vector<1x8x8xf32> to vector<8x8xf32>
    %cst_12 = arith.constant dense<0.000000e+00> : vector<8x256xf32>
    %17 = tpu.matmul %16, %14, %cst_12 {dimension_numbers = #tpu.dot_dimension_numbers<[1], [0], [0], [1], [0, 0, 1, 1], [], []>} : vector<8x8xf32>, vector<8x256xf32>, vector<8x256xf32> -> vector<8x256xf32>
    %18 = arith.addf %13, %17 : vector<8x256xf32>
    %c252_i32 = arith.constant 252 : i32
    %19 = tpu.dynamic_rotate %0 by %c252_i32 dim 1 : vector<8x256xf32>, i32 -> vector<8x256xf32>
    %c4 = arith.constant 4 : index
    %c0_13 = arith.constant 0 : index
    %c0_14 = arith.constant 0 : index
    %20 = vector.load %arg1[%c4, %c0_13, %c0_14] : memref<10x8x8xf32, #tpu.memory_space<vmem>>, vector<1x8x8xf32>
    %21 = vector.shape_cast %20 : vector<1x8x8xf32> to vector<8x8xf32>
    %cst_15 = arith.constant dense<0.000000e+00> : vector<8x256xf32>
    %22 = tpu.matmul %21, %19, %cst_15 {dimension_numbers = #tpu.dot_dimension_numbers<[1], [0], [0], [1], [0, 0, 1, 1], [], []>} : vector<8x8xf32>, vector<8x256xf32>, vector<8x256xf32> -> vector<8x256xf32>
    %23 = arith.addf %18, %22 : vector<8x256xf32>
    %c0_16 = arith.constant 0 : index
    %c0_17 = arith.constant 0 : index
    %c0_18 = arith.constant 0 : index
    %24 = vector.load %arg2[%c0_16, %c0_17, %c0_18] : memref<2x8x1xf32, #tpu.memory_space<vmem>>, vector<1x8x1xf32>
    %25 = vector.shape_cast %24 : vector<1x8x1xf32> to vector<8x1xf32>
    %26 = vector.broadcast %25 : vector<8x1xf32> to vector<8x256xf32>
    %27 = arith.addf %23, %26 : vector<8x256xf32>
    %cst_19 = arith.constant 0.000000e+00 : f32
    %28 = vector.broadcast %cst_19 : f32 to vector<8x256xf32>
    %29 = arith.maximumf %27, %28 : vector<8x256xf32>
    %c5 = arith.constant 5 : index
    %c0_20 = arith.constant 0 : index
    %c0_21 = arith.constant 0 : index
    %30 = vector.load %arg1[%c5, %c0_20, %c0_21] : memref<10x8x8xf32, #tpu.memory_space<vmem>>, vector<1x8x8xf32>
    %31 = vector.shape_cast %30 : vector<1x8x8xf32> to vector<8x8xf32>
    %cst_22 = arith.constant dense<0.000000e+00> : vector<8x256xf32>
    %32 = tpu.matmul %31, %29, %cst_22 {dimension_numbers = #tpu.dot_dimension_numbers<[1], [0], [0], [1], [0, 0, 1, 1], [], []>} : vector<8x8xf32>, vector<8x256xf32>, vector<8x256xf32> -> vector<8x256xf32>
    %c255_i32_23 = arith.constant 255 : i32
    %33 = tpu.dynamic_rotate %29 by %c255_i32_23 dim 1 : vector<8x256xf32>, i32 -> vector<8x256xf32>
    %c6 = arith.constant 6 : index
    %c0_24 = arith.constant 0 : index
    %c0_25 = arith.constant 0 : index
    %34 = vector.load %arg1[%c6, %c0_24, %c0_25] : memref<10x8x8xf32, #tpu.memory_space<vmem>>, vector<1x8x8xf32>
    %35 = vector.shape_cast %34 : vector<1x8x8xf32> to vector<8x8xf32>
    %cst_26 = arith.constant dense<0.000000e+00> : vector<8x256xf32>
    %36 = tpu.matmul %35, %33, %cst_26 {dimension_numbers = #tpu.dot_dimension_numbers<[1], [0], [0], [1], [0, 0, 1, 1], [], []>} : vector<8x8xf32>, vector<8x256xf32>, vector<8x256xf32> -> vector<8x256xf32>
    %37 = arith.addf %32, %36 : vector<8x256xf32>
    %c254_i32_27 = arith.constant 254 : i32
    %38 = tpu.dynamic_rotate %29 by %c254_i32_27 dim 1 : vector<8x256xf32>, i32 -> vector<8x256xf32>
    %c7 = arith.constant 7 : index
    %c0_28 = arith.constant 0 : index
    %c0_29 = arith.constant 0 : index
    %39 = vector.load %arg1[%c7, %c0_28, %c0_29] : memref<10x8x8xf32, #tpu.memory_space<vmem>>, vector<1x8x8xf32>
    %40 = vector.shape_cast %39 : vector<1x8x8xf32> to vector<8x8xf32>
    %cst_30 = arith.constant dense<0.000000e+00> : vector<8x256xf32>
    %41 = tpu.matmul %40, %38, %cst_30 {dimension_numbers = #tpu.dot_dimension_numbers<[1], [0], [0], [1], [0, 0, 1, 1], [], []>} : vector<8x8xf32>, vector<8x256xf32>, vector<8x256xf32> -> vector<8x256xf32>
    %42 = arith.addf %37, %41 : vector<8x256xf32>
    %c253_i32_31 = arith.constant 253 : i32
    %43 = tpu.dynamic_rotate %29 by %c253_i32_31 dim 1 : vector<8x256xf32>, i32 -> vector<8x256xf32>
    %c8 = arith.constant 8 : index
    %c0_32 = arith.constant 0 : index
    %c0_33 = arith.constant 0 : index
    %44 = vector.load %arg1[%c8, %c0_32, %c0_33] : memref<10x8x8xf32, #tpu.memory_space<vmem>>, vector<1x8x8xf32>
    %45 = vector.shape_cast %44 : vector<1x8x8xf32> to vector<8x8xf32>
    %cst_34 = arith.constant dense<0.000000e+00> : vector<8x256xf32>
    %46 = tpu.matmul %45, %43, %cst_34 {dimension_numbers = #tpu.dot_dimension_numbers<[1], [0], [0], [1], [0, 0, 1, 1], [], []>} : vector<8x8xf32>, vector<8x256xf32>, vector<8x256xf32> -> vector<8x256xf32>
    %47 = arith.addf %42, %46 : vector<8x256xf32>
    %c252_i32_35 = arith.constant 252 : i32
    %48 = tpu.dynamic_rotate %29 by %c252_i32_35 dim 1 : vector<8x256xf32>, i32 -> vector<8x256xf32>
    %c9 = arith.constant 9 : index
    %c0_36 = arith.constant 0 : index
    %c0_37 = arith.constant 0 : index
    %49 = vector.load %arg1[%c9, %c0_36, %c0_37] : memref<10x8x8xf32, #tpu.memory_space<vmem>>, vector<1x8x8xf32>
    %50 = vector.shape_cast %49 : vector<1x8x8xf32> to vector<8x8xf32>
    %cst_38 = arith.constant dense<0.000000e+00> : vector<8x256xf32>
    %51 = tpu.matmul %50, %48, %cst_38 {dimension_numbers = #tpu.dot_dimension_numbers<[1], [0], [0], [1], [0, 0, 1, 1], [], []>} : vector<8x8xf32>, vector<8x256xf32>, vector<8x256xf32> -> vector<8x256xf32>
    %52 = arith.addf %47, %51 : vector<8x256xf32>
    %c1_39 = arith.constant 1 : index
    %c0_40 = arith.constant 0 : index
    %c0_41 = arith.constant 0 : index
    %53 = vector.load %arg2[%c1_39, %c0_40, %c0_41] : memref<2x8x1xf32, #tpu.memory_space<vmem>>, vector<1x8x1xf32>
    %54 = vector.shape_cast %53 : vector<1x8x1xf32> to vector<8x1xf32>
    %55 = vector.broadcast %54 : vector<8x1xf32> to vector<8x256xf32>
    %56 = arith.addf %52, %55 : vector<8x256xf32>
    %c0_42 = arith.constant 0 : index
    %c0_43 = arith.constant 0 : index
    %57 = vector.load %arg3[%c0_42, %c0_43] : memref<8x256xf32, #tpu.memory_space<vmem>>, vector<8x256xf32>
    tpu.vector_store %arg3[%c0_42, %c0_43], %56 {strides = array<i32>} : memref<8x256xf32, #tpu.memory_space<vmem>>, vector<8x256xf32>,
    return
  }
}

</mosaic_0001>

<llo_original>
// kernel: tpu_custom_call.1
$region0: #{tpu_custom_call.1}
  #allocation0 [shape = 'u32[]', space=smem, size = 0x4, offset = 0x4, fixed_abs, tag = 'smem constant byte address 0x4 - core index']
  #allocation1 [shape = 'u32[144,128]{1,0:T(1,128)}', space=vmem, size = 0x12000, scoped, tag = 'internal scratch']
  %s0 = inlined_call_operand.vmem [shape: f32[8,256], index: 0, kind: input, shape index: {}]
  %s1 = inlined_call_operand.vmem [shape: f32[10,8,8], index: 1, kind: input, shape index: {}]
  %s2 = inlined_call_operand.vmem [shape: f32[2,8,1], index: 2, kind: input, shape index: {}]
  %s3 = inlined_call_operand.hbm [shape: f32[8,256], index: 3, kind: output, shape index: {}]
  %s4 = sld [smem:[#allocation0]]
  $region22: #{tpu_custom_call.1} parent=0
    _
  %s6 = ssub.s32 1, %s4
  %s7 = scalar_select 0, %s6, %s4
  $region1: #{tpu_custom_call.1} parent=0
    #allocation2 [shape = 'u8[8192]{0}', space=vmem, size = 0x2000, scoped, tag = 'output window, operand 0, single buffered']
    #allocation3 [shape = 's32[1]{0}', space=sflag, size = 0x4, scoped, tag = 'scoped memory for tpu_custom_call.1']
    %8 = vsyncpa [#allocation3], 0
    // Predicated region
    $region2: #{tpu_custom_call.1} parent=1 // pred_check
      _
    $region3: #{tpu_custom_call.1} parent=1 // pred_check_branch
      %10 = sbr.rel (0) target = $region5
    $region4: #{tpu_custom_call.1} parent=1 // pred_region
      _
    $region5: #{tpu_custom_call.1} parent=1 // pred_fallthru
      _
    // Predicated region
    $region6: #{tpu_custom_call.1} parent=1 // pred_check
      _
    $region7: #{tpu_custom_call.1} parent=1 // pred_check_branch
      %12 = sbr.rel (0) target = $region9
    $region8: #{tpu_custom_call.1} parent=1 // pred_region
      _
    $region9: #{tpu_custom_call.1} parent=1 // pred_fallthru
      _
    // Predicated region
    $region10: #{tpu_custom_call.1} parent=1 // pred_check
      _
    $region11: #{tpu_custom_call.1} parent=1 // pred_check_branch
      %14 = sbr.rel (0) target = $region13
    $region12: #{tpu_custom_call.1} parent=1 // pred_region
      _
    $region13: #{tpu_custom_call.1} parent=1 // pred_fallthru
      _
    %v15 = vld [vmem:[%s0] sm:$0xff]
    %v16 = vld [vmem:[%s0 + $0x8] sm:$0xff]
    %v17 = vld [vmem:[%s1] sm:$0xff]
    %18 = vrot.lane.b32.xlu0 %v15, 127
    %v19 = vpop.permute.xlu0 %18
    %20 = vrot.lane.b32.xlu0 %v16, 127
    %v21 = vpop.permute.xlu0 %20
    %v22 = vlaneseq
    %v23 = vand.u32 %v22, 127
    %vm24 = vcmp.lt.s32.totalorder %v23, 127
    %v25 = vsel %vm24, %v19, %v21
    %v26 = vsel %vm24, %v21, %v19
    %s27 = scalar_lea.vmem %s1, 8
    %v28 = vld [vmem:[%s27] sm:$0xff]
    %vm29 = vcmask 64512
    %v31 = vsel %vm29, %v28, 0
    %33 = vmatprep.subr.mxu0 0.0
    %34 = vmatpush1.msra.mxu0 0.0
    %35 = vmatprep.subr.mxu0 0.0
    %36 = vmatpush1.msra.mxu0 0.0
    %37 = vmatprep.subr.mxu0 0.0
    %38 = vmatpush1.msra.mxu0 0.0
    %39 = vmatprep.subr.mxu0 0.0
    %40 = vmatpush1.msra.mxu0 0.0
    %41 = vmatprep.subr.mxu0 0.0
    %42 = vmatpush1.msra.mxu0 0.0
    %43 = vmatprep.subr.mxu0 0.0
    %44 = vmatpush1.msra.mxu0 0.0
    %45 = vmatprep.subr.mxu0 0.0
    %46 = vmatpush1.msra.mxu0 0.0
    %47 = vmatprep.subr.mxu0 0.0
    %48 = vmatpush1.msra.mxu0 0.0
    %49 = vmatprep.subr.mxu0 0.0
    %50 = vmatpush1.msra.mxu0 0.0
    %51 = vmatprep.subr.mxu0 0.0
    %52 = vmatpush1.msra.mxu0 0.0
    %53 = vmatprep.subr.mxu0 0.0
    %54 = vmatpush1.msra.mxu0 0.0
    %55 = vmatprep.subr.mxu0 0.0
    %56 = vmatpush1.msra.mxu0 0.0
    %57 = vmatprep.subr.mxu0 0.0
    %58 = vmatpush1.msra.mxu0 0.0
    %59 = vmatprep.subr.mxu0 0.0
    %60 = vmatpush1.msra.mxu0 0.0
    %61 = vmatprep.subr.mxu0 0.0
    %62 = vmatpush1.msra.mxu0 0.0
    %63 = vmatprep.subr.mxu0 %v26
    %64 = vmatpush1.msra.mxu0 %v25
    %65 = vmatprep.subr.mxu0 0.0
    %66 = vmatpush2.msra.mxu0 0.0
    %67 = vmatprep.subr.mxu0 0.0
    %68 = vmatpush2.msra.mxu0 0.0
    %69 = vmatprep.subr.mxu0 0.0
    %70 = vmatpush2.msra.mxu0 0.0
    %71 = vmatprep.subr.mxu0 0.0
    %72 = vmatpush2.msra.mxu0 0.0
    %73 = vmatprep.subr.mxu0 0.0
    %74 = vmatpush2.msra.mxu0 0.0
    %75 = vmatprep.subr.mxu0 0.0
    %76 = vmatpush2.msra.mxu0 0.0
    %77 = vmatprep.subr.mxu0 0.0
    %78 = vmatpush2.msra.mxu0 0.0
    %79 = vmatprep.subr.mxu0 0.0
    %80 = vmatpush2.msra.mxu0 0.0
    %81 = vmatprep.subr.mxu0 0.0
    %82 = vmatpush2.msra.mxu0 0.0
    %83 = vmatprep.subr.mxu0 0.0
    %84 = vmatpush2.msra.mxu0 0.0
    %85 = vmatprep.subr.mxu0 0.0
    %86 = vmatpush2.msra.mxu0 0.0
    %87 = vmatprep.subr.mxu0 0.0
    %88 = vmatpush2.msra.mxu0 0.0
    %89 = vmatprep.subr.mxu0 0.0
    %90 = vmatpush2.msra.mxu0 0.0
    %91 = vmatprep.subr.mxu0 0.0
    %92 = vmatpush2.msra.mxu0 0.0
    %93 = vmatprep.subr.mxu0 0.0
    %94 = vmatpush2.msra.mxu0 0.0
    %95 = vmatprep.subr.mxu0 0.0
    %96 = vmatpush2.msra.mxu0 0.0
    %97 = vmatprep.mubr.f32.mxu0 0.0
    %98 = vmatmul.mubr.f32.gmra.mxu0 %v31
    %v99 = vpop.f32.mrf.mxu0
    %v100 = vadd.f32 0.0, %v99
    %v101 = vpop.f32.mrf.mxu0
    %v102 = vadd.f32 0.0, %v101
    %103 = vdwg.mxu0
    %v105 = vsel %vm29, %v17, 0
    %107 = vmatprep.subr.mxu0 0.0
    %108 = vmatpush1.msra.mxu0 0.0
    %109 = vmatprep.subr.mxu0 0.0
    %110 = vmatpush1.msra.mxu0 0.0
    %111 = vmatprep.subr.mxu0 0.0
    %112 = vmatpush1.msra.mxu0 0.0
    %113 = vmatprep.subr.mxu0 0.0
    %114 = vmatpush1.msra.mxu0 0.0
    %115 = vmatprep.subr.mxu0 0.0
    %116 = vmatpush1.msra.mxu0 0.0
    %117 = vmatprep.subr.mxu0 0.0
    %118 = vmatpush1.msra.mxu0 0.0
    %119 = vmatprep.subr.mxu0 0.0
    %120 = vmatpush1.msra.mxu0 0.0
    %121 = vmatprep.subr.mxu0 0.0
    %122 = vmatpush1.msra.mxu0 0.0
    %123 = vmatprep.subr.mxu0 0.0
    %124 = vmatpush1.msra.mxu0 0.0
    %125 = vmatprep.subr.mxu0 0.0
    %126 = vmatpush1.msra.mxu0 0.0
    %127 = vmatprep.subr.mxu0 0.0
    %128 = vmatpush1.msra.mxu0 0.0
    %129 = vmatprep.subr.mxu0 0.0
    %130 = vmatpush1.msra.mxu0 0.0
    %131 = vmatprep.subr.mxu0 0.0
    %132 = vmatpush1.msra.mxu0 0.0
    %133 = vmatprep.subr.mxu0 0.0
    %134 = vmatpush1.msra.mxu0 0.0
    %135 = vmatprep.subr.mxu0 0.0
    %136 = vmatpush1.msra.mxu0 0.0
    %137 = vmatprep.subr.mxu0 %v16
    %138 = vmatpush1.msra.mxu0 %v15
    %139 = vmatprep.subr.mxu0 0.0
    %140 = vmatpush2.msra.mxu0 0.0
    %141 = vmatprep.subr.mxu0 0.0
    %142 = vmatpush2.msra.mxu0 0.0
    %143 = vmatprep.subr.mxu0 0.0
    %144 = vmatpush2.msra.mxu0 0.0
    %145 = vmatprep.subr.mxu0 0.0
    %146 = vmatpush2.msra.mxu0 0.0
    %147 = vmatprep.subr.mxu0 0.0
    %148 = vmatpush2.msra.mxu0 0.0
    %149 = vmatprep.subr.mxu0 0.0
    %150 = vmatpush2.msra.mxu0 0.0
    %151 = vmatprep.subr.mxu0 0.0
    %152 = vmatpush2.msra.mxu0 0.0
    %153 = vmatprep.subr.mxu0 0.0
    %154 = vmatpush2.msra.mxu0 0.0
    %155 = vmatprep.subr.mxu0 0.0
    %156 = vmatpush2.msra.mxu0 0.0
    %157 = vmatprep.subr.mxu0 0.0
    %158 = vmatpush2.msra.mxu0 0.0
    %159 = vmatprep.subr.mxu0 0.0
    %160 = vmatpush2.msra.mxu0 0.0
    %161 = vmatprep.subr.mxu0 0.0
    %162 = vmatpush2.msra.mxu0 0.0
    %163 = vmatprep.subr.mxu0 0.0
    %164 = vmatpush2.msra.mxu0 0.0
    %165 = vmatprep.subr.mxu0 0.0
    %166 = vmatpush2.msra.mxu0 0.0
    %167 = vmatprep.subr.mxu0 0.0
    %168 = vmatpush2.msra.mxu0 0.0
    %169 = vmatprep.subr.mxu0 0.0
    %170 = vmatpush2.msra.mxu0 0.0
    %171 = vmatprep.mubr.f32.mxu0 0.0
    %172 = vmatmul.mubr.f32.gmra.mxu0 %v105
    %v173 = vpop.f32.mrf.mxu0
    %v174 = vadd.f32 %v100, %v173
    %v175 = vpop.f32.mrf.mxu0
    %v176 = vadd.f32 %v102, %v175
    %177 = vdwg.mxu0
    %178 = vrot.lane.b32.xlu0 %v15, 126
    %v179 = vpop.permute.xlu0 %178
    %180 = vrot.lane.b32.xlu0 %v16, 126
    %v181 = vpop.permute.xlu0 %180
    %vm182 = vcmp.lt.s32.totalorder %v23, 126
    %v183 = vsel %vm182, %v179, %v181
    %v184 = vsel %vm182, %v181, %v179
    %s185 = scalar_lea.vmem %s1, 16
    %v186 = vld [vmem:[%s185] sm:$0xff]
    %v188 = vsel %vm29, %v186, 0
    %190 = vmatprep.subr.mxu0 0.0
    %191 = vmatpush1.msra.mxu0 0.0
    %192 = vmatprep.subr.mxu0 0.0
    %193 = vmatpush1.msra.mxu0 0.0
    %194 = vmatprep.subr.mxu0 0.0
    %195 = vmatpush1.msra.mxu0 0.0
    %196 = vmatprep.subr.mxu0 0.0
    %197 = vmatpush1.msra.mxu0 0.0
    %198 = vmatprep.subr.mxu0 0.0
    %199 = vmatpush1.msra.mxu0 0.0
    %200 = vmatprep.subr.mxu0 0.0
    %201 = vmatpush1.msra.mxu0 0.0
    %202 = vmatprep.subr.mxu0 0.0
    %203 = vmatpush1.msra.mxu0 0.0
    %204 = vmatprep.subr.mxu0 0.0
    %205 = vmatpush1.msra.mxu0 0.0
    %206 = vmatprep.subr.mxu0 0.0
    %207 = vmatpush1.msra.mxu0 0.0
    %208 = vmatprep.subr.mxu0 0.0
    %209 = vmatpush1.msra.mxu0 0.0
    %210 = vmatprep.subr.mxu0 0.0
    %211 = vmatpush1.msra.mxu0 0.0
    %212 = vmatprep.subr.mxu0 0.0
    %213 = vmatpush1.msra.mxu0 0.0
    %214 = vmatprep.subr.mxu0 0.0
    %215 = vmatpush1.msra.mxu0 0.0
    %216 = vmatprep.subr.mxu0 0.0
    %217 = vmatpush1.msra.mxu0 0.0
    %218 = vmatprep.subr.mxu0 0.0
    %219 = vmatpush1.msra.mxu0 0.0
    %220 = vmatprep.subr.mxu0 %v184
    %221 = vmatpush1.msra.mxu0 %v183
    %222 = vmatprep.subr.mxu0 0.0
    %223 = vmatpush2.msra.mxu0 0.0
    %224 = vmatprep.subr.mxu0 0.0
    %225 = vmatpush2.msra.mxu0 0.0
    %226 = vmatprep.subr.mxu0 0.0
    %227 = vmatpush2.msra.mxu0 0.0
    %228 = vmatprep.subr.mxu0 0.0
    %229 = vmatpush2.msra.mxu0 0.0
    %230 = vmatprep.subr.mxu0 0.0
    %231 = vmatpush2.msra.mxu0 0.0
    %232 = vmatprep.subr.mxu0 0.0
    %233 = vmatpush2.msra.mxu0 0.0
    %234 = vmatprep.subr.mxu0 0.0
    %235 = vmatpush2.msra.mxu0 0.0
    %236 = vmatprep.subr.mxu0 0.0
    %237 = vmatpush2.msra.mxu0 0.0
    %238 = vmatprep.subr.mxu0 0.0
    %239 = vmatpush2.msra.mxu0 0.0
    %240 = vmatprep.subr.mxu0 0.0
    %241 = vmatpush2.msra.mxu0 0.0
    %242 = vmatprep.subr.mxu0 0.0
    %243 = vmatpush2.msra.mxu0 0.0
    %244 = vmatprep.subr.mxu0 0.0
    %245 = vmatpush2.msra.mxu0 0.0
    %246 = vmatprep.subr.mxu0 0.0
    %247 = vmatpush2.msra.mxu0 0.0
    %248 = vmatprep.subr.mxu0 0.0
    %249 = vmatpush2.msra.mxu0 0.0
    %250 = vmatprep.subr.mxu0 0.0
    %251 = vmatpush2.msra.mxu0 0.0
    %252 = vmatprep.subr.mxu0 0.0
    %253 = vmatpush2.msra.mxu0 0.0
    %254 = vmatprep.mubr.f32.mxu0 0.0
    %255 = vmatmul.mubr.f32.gmra.mxu0 %v188
    %v256 = vpop.f32.mrf.mxu0
    %v257 = vadd.f32 0.0, %v256
    %v258 = vpop.f32.mrf.mxu0
    %v259 = vadd.f32 0.0, %v258
    %260 = vdwg.mxu0
    %v261 = vadd.f32 %v174, %v257
    %v262 = vadd.f32 %v176, %v259
    %263 = vrot.lane.b32.xlu0 %v15, 125
    %v264 = vpop.permute.xlu0 %263
    %265 = vrot.lane.b32.xlu0 %v16, 125
    %v266 = vpop.permute.xlu0 %265
    %vm267 = vcmp.lt.s32.totalorder %v23, 125
    %v268 = vsel %vm267, %v264, %v266
    %v269 = vsel %vm267, %v266, %v264
    %s270 = scalar_lea.vmem %s1, 24
    %v271 = vld [vmem:[%s270] sm:$0xff]
    %v273 = vsel %vm29, %v271, 0
    %275 = vmatprep.subr.mxu0 0.0
    %276 = vmatpush1.msra.mxu0 0.0
    %277 = vmatprep.subr.mxu0 0.0
    %278 = vmatpush1.msra.mxu0 0.0
    %279 = vmatprep.subr.mxu0 0.0
    %280 = vmatpush1.msra.mxu0 0.0
    %281 = vmatprep.subr.mxu0 0.0
    %282 = vmatpush1.msra.mxu0 0.0
    %283 = vmatprep.subr.mxu0 0.0
    %284 = vmatpush1.msra.mxu0 0.0
    %285 = vmatprep.subr.mxu0 0.0
    %286 = vmatpush1.msra.mxu0 0.0
    %287 = vmatprep.subr.mxu0 0.0
    %288 = vmatpush1.msra.mxu0 0.0
    %289 = vmatprep.subr.mxu0 0.0
    %290 = vmatpush1.msra.mxu0 0.0
    %291 = vmatprep.subr.mxu0 0.0
    %292 = vmatpush1.msra.mxu0 0.0
    %293 = vmatprep.subr.mxu0 0.0
    %294 = vmatpush1.msra.mxu0 0.0
    %295 = vmatprep.subr.mxu0 0.0
    %296 = vmatpush1.msra.mxu0 0.0
    %297 = vmatprep.subr.mxu0 0.0
    %298 = vmatpush1.msra.mxu0 0.0
    %299 = vmatprep.subr.mxu0 0.0
    %300 = vmatpush1.msra.mxu0 0.0
    %301 = vmatprep.subr.mxu0 0.0
    %302 = vmatpush1.msra.mxu0 0.0
    %303 = vmatprep.subr.mxu0 0.0
    %304 = vmatpush1.msra.mxu0 0.0
    %305 = vmatprep.subr.mxu0 %v269
    %306 = vmatpush1.msra.mxu0 %v268
    %307 = vmatprep.subr.mxu0 0.0
    %308 = vmatpush2.msra.mxu0 0.0
    %309 = vmatprep.subr.mxu0 0.0
    %310 = vmatpush2.msra.mxu0 0.0
    %311 = vmatprep.subr.mxu0 0.0
    %312 = vmatpush2.msra.mxu0 0.0
    %313 = vmatprep.subr.mxu0 0.0
    %314 = vmatpush2.msra.mxu0 0.0
    %315 = vmatprep.subr.mxu0 0.0
    %316 = vmatpush2.msra.mxu0 0.0
    %317 = vmatprep.subr.mxu0 0.0
    %318 = vmatpush2.msra.mxu0 0.0
    %319 = vmatprep.subr.mxu0 0.0
    %320 = vmatpush2.msra.mxu0 0.0
    %321 = vmatprep.subr.mxu0 0.0
    %322 = vmatpush2.msra.mxu0 0.0
    %323 = vmatprep.subr.mxu0 0.0
    %324 = vmatpush2.msra.mxu0 0.0
    %325 = vmatprep.subr.mxu0 0.0
    %326 = vmatpush2.msra.mxu0 0.0
    %327 = vmatprep.subr.mxu0 0.0
    %328 = vmatpush2.msra.mxu0 0.0
    %329 = vmatprep.subr.mxu0 0.0
    %330 = vmatpush2.msra.mxu0 0.0
    %331 = vmatprep.subr.mxu0 0.0
    %332 = vmatpush2.msra.mxu0 0.0
    %333 = vmatprep.subr.mxu0 0.0
    %334 = vmatpush2.msra.mxu0 0.0
    %335 = vmatprep.subr.mxu0 0.0
    %336 = vmatpush2.msra.mxu0 0.0
    %337 = vmatprep.subr.mxu0 0.0
    %338 = vmatpush2.msra.mxu0 0.0
    %339 = vmatprep.mubr.f32.mxu0 0.0
    %340 = vmatmul.mubr.f32.gmra.mxu0 %v273
    %v341 = vpop.f32.mrf.mxu0
    %v342 = vadd.f32 0.0, %v341
    %v343 = vpop.f32.mrf.mxu0
    %v344 = vadd.f32 0.0, %v343
    %345 = vdwg.mxu0
    %v346 = vadd.f32 %v261, %v342
    %v347 = vadd.f32 %v262, %v344
    %348 = vrot.lane.b32.xlu0 %v15, 124
    %v349 = vpop.permute.xlu0 %348
    %350 = vrot.lane.b32.xlu0 %v16, 124
    %v351 = vpop.permute.xlu0 %350
    %vm352 = vcmp.lt.s32.totalorder %v23, 124
    %v353 = vsel %vm352, %v349, %v351
    %v354 = vsel %vm352, %v351, %v349
    %s355 = scalar_lea.vmem %s1, 32
    %v356 = vld [vmem:[%s355] sm:$0xff]
    %v358 = vsel %vm29, %v356, 0
    %360 = vmatprep.subr.mxu0 0.0
    %361 = vmatpush1.msra.mxu0 0.0
    %362 = vmatprep.subr.mxu0 0.0
    %363 = vmatpush1.msra.mxu0 0.0
    %364 = vmatprep.subr.mxu0 0.0
    %365 = vmatpush1.msra.mxu0 0.0
    %366 = vmatprep.subr.mxu0 0.0
    %367 = vmatpush1.msra.mxu0 0.0
    %368 = vmatprep.subr.mxu0 0.0
    %369 = vmatpush1.msra.mxu0 0.0
    %370 = vmatprep.subr.mxu0 0.0
    %371 = vmatpush1.msra.mxu0 0.0
    %372 = vmatprep.subr.mxu0 0.0
    %373 = vmatpush1.msra.mxu0 0.0
    %374 = vmatprep.subr.mxu0 0.0
    %375 = vmatpush1.msra.mxu0 0.0
    %376 = vmatprep.subr.mxu0 0.0
    %377 = vmatpush1.msra.mxu0 0.0
    %378 = vmatprep.subr.mxu0 0.0
    %379 = vmatpush1.msra.mxu0 0.0
    %380 = vmatprep.subr.mxu0 0.0
    %381 = vmatpush1.msra.mxu0 0.0
    %382 = vmatprep.subr.mxu0 0.0
    %383 = vmatpush1.msra.mxu0 0.0
    %384 = vmatprep.subr.mxu0 0.0
    %385 = vmatpush1.msra.mxu0 0.0
    %386 = vmatprep.subr.mxu0 0.0
    %387 = vmatpush1.msra.mxu0 0.0
    %388 = vmatprep.subr.mxu0 0.0
    %389 = vmatpush1.msra.mxu0 0.0
    %390 = vmatprep.subr.mxu0 %v354
    %391 = vmatpush1.msra.mxu0 %v353
    %392 = vmatprep.subr.mxu0 0.0
    %393 = vmatpush2.msra.mxu0 0.0
    %394 = vmatprep.subr.mxu0 0.0
    %395 = vmatpush2.msra.mxu0 0.0
    %396 = vmatprep.subr.mxu0 0.0
    %397 = vmatpush2.msra.mxu0 0.0
    %398 = vmatprep.subr.mxu0 0.0
    %399 = vmatpush2.msra.mxu0 0.0
    %400 = vmatprep.subr.mxu0 0.0
    %401 = vmatpush2.msra.mxu0 0.0
    %402 = vmatprep.subr.mxu0 0.0
    %403 = vmatpush2.msra.mxu0 0.0
    %404 = vmatprep.subr.mxu0 0.0
    %405 = vmatpush2.msra.mxu0 0.0
    %406 = vmatprep.subr.mxu0 0.0
    %407 = vmatpush2.msra.mxu0 0.0
    %408 = vmatprep.subr.mxu0 0.0
    %409 = vmatpush2.msra.mxu0 0.0
    %410 = vmatprep.subr.mxu0 0.0
    %411 = vmatpush2.msra.mxu0 0.0
    %412 = vmatprep.subr.mxu0 0.0
    %413 = vmatpush2.msra.mxu0 0.0
    %414 = vmatprep.subr.mxu0 0.0
    %415 = vmatpush2.msra.mxu0 0.0
    %416 = vmatprep.subr.mxu0 0.0
    %417 = vmatpush2.msra.mxu0 0.0
    %418 = vmatprep.subr.mxu0 0.0
    %419 = vmatpush2.msra.mxu0 0.0
    %420 = vmatprep.subr.mxu0 0.0
    %421 = vmatpush2.msra.mxu0 0.0
    %422 = vmatprep.subr.mxu0 0.0
    %423 = vmatpush2.msra.mxu0 0.0
    %424 = vmatprep.mubr.f32.mxu0 0.0
    %425 = vmatmul.mubr.f32.gmra.mxu0 %v358
    %v426 = vpop.f32.mrf.mxu0
    %v427 = vadd.f32 0.0, %v426
    %v428 = vpop.f32.mrf.mxu0
    %v429 = vadd.f32 0.0, %v428
    %430 = vdwg.mxu0
    %v431 = vadd.f32 %v346, %v427
    %v432 = vadd.f32 %v347, %v429
    %v433 = vld [vmem:[%s2] sm:$0xff]
    %435 = vset.pattern.permute.xlu0 0
    %436 = vperm.xlu0 %435, %v433
    %v437 = vpop.permute.xlu0 %436
    %v439 = vadd.f32 %v431, %v437
    %v440 = vadd.f32 %v432, %v437
    %v441 = vmax.f32 %v439, 0.0
    %v442 = vmax.f32 %v440, 0.0
    %s443 = scalar_lea.vmem %s1, 40
    %v444 = vld [vmem:[%s443] sm:$0xff]
    %445 = vrot.lane.b32.xlu0 %v441, 127
    %v446 = vpop.permute.xlu0 %445
    %447 = vrot.lane.b32.xlu0 %v442, 127
    %v448 = vpop.permute.xlu0 %447
    %v449 = vsel %vm24, %v446, %v448
    %v450 = vsel %vm24, %v448, %v446
    %s451 = scalar_lea.vmem %s1, 48
    %v452 = vld [vmem:[%s451] sm:$0xff]
    %v454 = vsel %vm29, %v452, 0
    %456 = vmatprep.subr.mxu0 0.0
    %457 = vmatpush1.msra.mxu0 0.0
    %458 = vmatprep.subr.mxu0 0.0
    %459 = vmatpush1.msra.mxu0 0.0
    %460 = vmatprep.subr.mxu0 0.0
    %461 = vmatpush1.msra.mxu0 0.0
    %462 = vmatprep.subr.mxu0 0.0
    %463 = vmatpush1.msra.mxu0 0.0
    %464 = vmatprep.subr.mxu0 0.0
    %465 = vmatpush1.msra.mxu0 0.0
    %466 = vmatprep.subr.mxu0 0.0
    %467 = vmatpush1.msra.mxu0 0.0
    %468 = vmatprep.subr.mxu0 0.0
    %469 = vmatpush1.msra.mxu0 0.0
    %470 = vmatprep.subr.mxu0 0.0
    %471 = vmatpush1.msra.mxu0 0.0
    %472 = vmatprep.subr.mxu0 0.0
    %473 = vmatpush1.msra.mxu0 0.0
    %474 = vmatprep.subr.mxu0 0.0
    %475 = vmatpush1.msra.mxu0 0.0
    %476 = vmatprep.subr.mxu0 0.0
    %477 = vmatpush1.msra.mxu0 0.0
    %478 = vmatprep.subr.mxu0 0.0
    %479 = vmatpush1.msra.mxu0 0.0
    %480 = vmatprep.subr.mxu0 0.0
    %481 = vmatpush1.msra.mxu0 0.0
    %482 = vmatprep.subr.mxu0 0.0
    %483 = vmatpush1.msra.mxu0 0.0
    %484 = vmatprep.subr.mxu0 0.0
    %485 = vmatpush1.msra.mxu0 0.0
    %486 = vmatprep.subr.mxu0 %v450
    %487 = vmatpush1.msra.mxu0 %v449
    %488 = vmatprep.subr.mxu0 0.0
    %489 = vmatpush2.msra.mxu0 0.0
    %490 = vmatprep.subr.mxu0 0.0
    %491 = vmatpush2.msra.mxu0 0.0
    %492 = vmatprep.subr.mxu0 0.0
    %493 = vmatpush2.msra.mxu0 0.0
    %494 = vmatprep.subr.mxu0 0.0
    %495 = vmatpush2.msra.mxu0 0.0
    %496 = vmatprep.subr.mxu0 0.0
    %497 = vmatpush2.msra.mxu0 0.0
    %498 = vmatprep.subr.mxu0 0.0
    %499 = vmatpush2.msra.mxu0 0.0
    %500 = vmatprep.subr.mxu0 0.0
    %501 = vmatpush2.msra.mxu0 0.0
    %502 = vmatprep.subr.mxu0 0.0
    %503 = vmatpush2.msra.mxu0 0.0
    %504 = vmatprep.subr.mxu0 0.0
    %505 = vmatpush2.msra.mxu0 0.0
    %506 = vmatprep.subr.mxu0 0.0
    %507 = vmatpush2.msra.mxu0 0.0
    %508 = vmatprep.subr.mxu0 0.0
    %509 = vmatpush2.msra.mxu0 0.0
    %510 = vmatprep.subr.mxu0 0.0
    %511 = vmatpush2.msra.mxu0 0.0
    %512 = vmatprep.subr.mxu0 0.0
    %513 = vmatpush2.msra.mxu0 0.0
    %514 = vmatprep.subr.mxu0 0.0
    %515 = vmatpush2.msra.mxu0 0.0
    %516 = vmatprep.subr.mxu0 0.0
    %517 = vmatpush2.msra.mxu0 0.0
    %518 = vmatprep.subr.mxu0 0.0
    %519 = vmatpush2.msra.mxu0 0.0
    %520 = vmatprep.mubr.f32.mxu0 0.0
    %521 = vmatmul.mubr.f32.gmra.mxu0 %v454
    %v522 = vpop.f32.mrf.mxu0
    %v523 = vadd.f32 0.0, %v522
    %v524 = vpop.f32.mrf.mxu0
    %v525 = vadd.f32 0.0, %v524
    %526 = vdwg.mxu0
    %v528 = vsel %vm29, %v444, 0
    %530 = vmatprep.subr.mxu0 0.0
    %531 = vmatpush1.msra.mxu0 0.0
    %532 = vmatprep.subr.mxu0 0.0
    %533 = vmatpush1.msra.mxu0 0.0
    %534 = vmatprep.subr.mxu0 0.0
    %535 = vmatpush1.msra.mxu0 0.0
    %536 = vmatprep.subr.mxu0 0.0
    %537 = vmatpush1.msra.mxu0 0.0
    %538 = vmatprep.subr.mxu0 0.0
    %539 = vmatpush1.msra.mxu0 0.0
    %540 = vmatprep.subr.mxu0 0.0
    %541 = vmatpush1.msra.mxu0 0.0
    %542 = vmatprep.subr.mxu0 0.0
    %543 = vmatpush1.msra.mxu0 0.0
    %544 = vmatprep.subr.mxu0 0.0
    %545 = vmatpush1.msra.mxu0 0.0
    %546 = vmatprep.subr.mxu0 0.0
    %547 = vmatpush1.msra.mxu0 0.0
    %548 = vmatprep.subr.mxu0 0.0
    %549 = vmatpush1.msra.mxu0 0.0
    %550 = vmatprep.subr.mxu0 0.0
    %551 = vmatpush1.msra.mxu0 0.0
    %552 = vmatprep.subr.mxu0 0.0
    %553 = vmatpush1.msra.mxu0 0.0
    %554 = vmatprep.subr.mxu0 0.0
    %555 = vmatpush1.msra.mxu0 0.0
    %556 = vmatprep.subr.mxu0 0.0
    %557 = vmatpush1.msra.mxu0 0.0
    %558 = vmatprep.subr.mxu0 0.0
    %559 = vmatpush1.msra.mxu0 0.0
    %560 = vmatprep.subr.mxu0 %v442
    %561 = vmatpush1.msra.mxu0 %v441
    %562 = vmatprep.subr.mxu0 0.0
    %563 = vmatpush2.msra.mxu0 0.0
    %564 = vmatprep.subr.mxu0 0.0
    %565 = vmatpush2.msra.mxu0 0.0
    %566 = vmatprep.subr.mxu0 0.0
    %567 = vmatpush2.msra.mxu0 0.0
    %568 = vmatprep.subr.mxu0 0.0
    %569 = vmatpush2.msra.mxu0 0.0
    %570 = vmatprep.subr.mxu0 0.0
    %571 = vmatpush2.msra.mxu0 0.0
    %572 = vmatprep.subr.mxu0 0.0
    %573 = vmatpush2.msra.mxu0 0.0
    %574 = vmatprep.subr.mxu0 0.0
    %575 = vmatpush2.msra.mxu0 0.0
    %576 = vmatprep.subr.mxu0 0.0
    %577 = vmatpush2.msra.mxu0 0.0
    %578 = vmatprep.subr.mxu0 0.0
    %579 = vmatpush2.msra.mxu0 0.0
    %580 = vmatprep.subr.mxu0 0.0
    %581 = vmatpush2.msra.mxu0 0.0
    %582 = vmatprep.subr.mxu0 0.0
    %583 = vmatpush2.msra.mxu0 0.0
    %584 = vmatprep.subr.mxu0 0.0
    %585 = vmatpush2.msra.mxu0 0.0
    %586 = vmatprep.subr.mxu0 0.0
    %587 = vmatpush2.msra.mxu0 0.0
    %588 = vmatprep.subr.mxu0 0.0
    %589 = vmatpush2.msra.mxu0 0.0
    %590 = vmatprep.subr.mxu0 0.0
    %591 = vmatpush2.msra.mxu0 0.0
    %592 = vmatprep.subr.mxu0 0.0
    %593 = vmatpush2.msra.mxu0 0.0
    %594 = vmatprep.mubr.f32.mxu0 0.0
    %595 = vmatmul.mubr.f32.gmra.mxu0 %v528
    %v596 = vpop.f32.mrf.mxu0
    %v597 = vadd.f32 %v523, %v596
    %v598 = vpop.f32.mrf.mxu0
    %v599 = vadd.f32 %v525, %v598
    %600 = vdwg.mxu0
    %601 = vrot.lane.b32.xlu0 %v441, 126
    %v602 = vpop.permute.xlu0 %601
    %603 = vrot.lane.b32.xlu0 %v442, 126
    %v604 = vpop.permute.xlu0 %603
    %v605 = vsel %vm182, %v602, %v604
    %v606 = vsel %vm182, %v604, %v602
    %s607 = scalar_lea.vmem %s1, 56
    %v608 = vld [vmem:[%s607] sm:$0xff]
    %v610 = vsel %vm29, %v608, 0
    %612 = vmatprep.subr.mxu0 0.0
    %613 = vmatpush1.msra.mxu0 0.0
    %614 = vmatprep.subr.mxu0 0.0
    %615 = vmatpush1.msra.mxu0 0.0
    %616 = vmatprep.subr.mxu0 0.0
    %617 = vmatpush1.msra.mxu0 0.0
    %618 = vmatprep.subr.mxu0 0.0
    %619 = vmatpush1.msra.mxu0 0.0
    %620 = vmatprep.subr.mxu0 0.0
    %621 = vmatpush1.msra.mxu0 0.0
    %622 = vmatprep.subr.mxu0 0.0
    %623 = vmatpush1.msra.mxu0 0.0
    %624 = vmatprep.subr.mxu0 0.0
    %625 = vmatpush1.msra.mxu0 0.0
    %626 = vmatprep.subr.mxu0 0.0
    %627 = vmatpush1.msra.mxu0 0.0
    %628 = vmatprep.subr.mxu0 0.0
    %629 = vmatpush1.msra.mxu0 0.0
    %630 = vmatprep.subr.mxu0 0.0
    %631 = vmatpush1.msra.mxu0 0.0
    %632 = vmatprep.subr.mxu0 0.0
    %633 = vmatpush1.msra.mxu0 0.0
    %634 = vmatprep.subr.mxu0 0.0
    %635 = vmatpush1.msra.mxu0 0.0
    %636 = vmatprep.subr.mxu0 0.0
    %637 = vmatpush1.msra.mxu0 0.0
    %638 = vmatprep.subr.mxu0 0.0
    %639 = vmatpush1.msra.mxu0 0.0
    %640 = vmatprep.subr.mxu0 0.0
    %641 = vmatpush1.msra.mxu0 0.0
    %642 = vmatprep.subr.mxu0 %v606
    %643 = vmatpush1.msra.mxu0 %v605
    %644 = vmatprep.subr.mxu0 0.0
    %645 = vmatpush2.msra.mxu0 0.0
    %646 = vmatprep.subr.mxu0 0.0
    %647 = vmatpush2.msra.mxu0 0.0
    %648 = vmatprep.subr.mxu0 0.0
    %649 = vmatpush2.msra.mxu0 0.0
    %650 = vmatprep.subr.mxu0 0.0
    %651 = vmatpush2.msra.mxu0 0.0
    %652 = vmatprep.subr.mxu0 0.0
    %653 = vmatpush2.msra.mxu0 0.0
    %654 = vmatprep.subr.mxu0 0.0
    %655 = vmatpush2.msra.mxu0 0.0
    %656 = vmatprep.subr.mxu0 0.0
    %657 = vmatpush2.msra.mxu0 0.0
    %658 = vmatprep.subr.mxu0 0.0
    %659 = vmatpush2.msra.mxu0 0.0
    %660 = vmatprep.subr.mxu0 0.0
    %661 = vmatpush2.msra.mxu0 0.0
    %662 = vmatprep.subr.mxu0 0.0
    %663 = vmatpush2.msra.mxu0 0.0
    %664 = vmatprep.subr.mxu0 0.0
    %665 = vmatpush2.msra.mxu0 0.0
    %666 = vmatprep.subr.mxu0 0.0
    %667 = vmatpush2.msra.mxu0 0.0
    %668 = vmatprep.subr.mxu0 0.0
    %669 = vmatpush2.msra.mxu0 0.0
    %670 = vmatprep.subr.mxu0 0.0
    %671 = vmatpush2.msra.mxu0 0.0
    %672 = vmatprep.subr.mxu0 0.0
    %673 = vmatpush2.msra.mxu0 0.0
    %674 = vmatprep.subr.mxu0 0.0
    %675 = vmatpush2.msra.mxu0 0.0
    %676 = vmatprep.mubr.f32.mxu0 0.0
    %677 = vmatmul.mubr.f32.gmra.mxu0 %v610
    %v678 = vpop.f32.mrf.mxu0
    %v679 = vadd.f32 0.0, %v678
    %v680 = vpop.f32.mrf.mxu0
    %v681 = vadd.f32 0.0, %v680
    %682 = vdwg.mxu0
    %v683 = vadd.f32 %v597, %v679
    %v684 = vadd.f32 %v599, %v681
    %685 = vrot.lane.b32.xlu0 %v441, 125
    %v686 = vpop.permute.xlu0 %685
    %687 = vrot.lane.b32.xlu0 %v442, 125
    %v688 = vpop.permute.xlu0 %687
    %v689 = vsel %vm267, %v686, %v688
    %v690 = vsel %vm267, %v688, %v686
    %s691 = scalar_lea.vmem %s1, 64
    %v692 = vld [vmem:[%s691] sm:$0xff]
    %v694 = vsel %vm29, %v692, 0
    %696 = vmatprep.subr.mxu0 0.0
    %697 = vmatpush1.msra.mxu0 0.0
    %698 = vmatprep.subr.mxu0 0.0
    %699 = vmatpush1.msra.mxu0 0.0
    %700 = vmatprep.subr.mxu0 0.0
    %701 = vmatpush1.msra.mxu0 0.0
    %702 = vmatprep.subr.mxu0 0.0
    %703 = vmatpush1.msra.mxu0 0.0
    %704 = vmatprep.subr.mxu0 0.0
    %705 = vmatpush1.msra.mxu0 0.0
    %706 = vmatprep.subr.mxu0 0.0
    %707 = vmatpush1.msra.mxu0 0.0
    %708 = vmatprep.subr.mxu0 0.0
    %709 = vmatpush1.msra.mxu0 0.0
    %710 = vmatprep.subr.mxu0 0.0
    %711 = vmatpush1.msra.mxu0 0.0
    %712 = vmatprep.subr.mxu0 0.0
    %713 = vmatpush1.msra.mxu0 0.0
    %714 = vmatprep.subr.mxu0 0.0
    %715 = vmatpush1.msra.mxu0 0.0
    %716 = vmatprep.subr.mxu0 0.0
    %717 = vmatpush1.msra.mxu0 0.0
    %718 = vmatprep.subr.mxu0 0.0
    %719 = vmatpush1.msra.mxu0 0.0
    %720 = vmatprep.subr.mxu0 0.0
    %721 = vmatpush1.msra.mxu0 0.0
    %722 = vmatprep.subr.mxu0 0.0
    %723 = vmatpush1.msra.mxu0 0.0
    %724 = vmatprep.subr.mxu0 0.0
    %725 = vmatpush1.msra.mxu0 0.0
    %726 = vmatprep.subr.mxu0 %v690
    %727 = vmatpush1.msra.mxu0 %v689
    %728 = vmatprep.subr.mxu0 0.0
    %729 = vmatpush2.msra.mxu0 0.0
    %730 = vmatprep.subr.mxu0 0.0
    %731 = vmatpush2.msra.mxu0 0.0
    %732 = vmatprep.subr.mxu0 0.0
    %733 = vmatpush2.msra.mxu0 0.0
    %734 = vmatprep.subr.mxu0 0.0
    %735 = vmatpush2.msra.mxu0 0.0
    %736 = vmatprep.subr.mxu0 0.0
    %737 = vmatpush2.msra.mxu0 0.0
    %738 = vmatprep.subr.mxu0 0.0
    %739 = vmatpush2.msra.mxu0 0.0
    %740 = vmatprep.subr.mxu0 0.0
    %741 = vmatpush2.msra.mxu0 0.0
    %742 = vmatprep.subr.mxu0 0.0
    %743 = vmatpush2.msra.mxu0 0.0
    %744 = vmatprep.subr.mxu0 0.0
    %745 = vmatpush2.msra.mxu0 0.0
    %746 = vmatprep.subr.mxu0 0.0
    %747 = vmatpush2.msra.mxu0 0.0
    %748 = vmatprep.subr.mxu0 0.0
    %749 = vmatpush2.msra.mxu0 0.0
    %750 = vmatprep.subr.mxu0 0.0
    %751 = vmatpush2.msra.mxu0 0.0
    %752 = vmatprep.subr.mxu0 0.0
    %753 = vmatpush2.msra.mxu0 0.0
    %754 = vmatprep.subr.mxu0 0.0
    %755 = vmatpush2.msra.mxu0 0.0
    %756 = vmatprep.subr.mxu0 0.0
    %757 = vmatpush2.msra.mxu0 0.0
    %758 = vmatprep.subr.mxu0 0.0
    %759 = vmatpush2.msra.mxu0 0.0
    %760 = vmatprep.mubr.f32.mxu0 0.0
    %761 = vmatmul.mubr.f32.gmra.mxu0 %v694
    %v762 = vpop.f32.mrf.mxu0
    %v763 = vadd.f32 0.0, %v762
    %v764 = vpop.f32.mrf.mxu0
    %v765 = vadd.f32 0.0, %v764
    %766 = vdwg.mxu0
    %v767 = vadd.f32 %v683, %v763
    %v768 = vadd.f32 %v684, %v765
    %769 = vrot.lane.b32.xlu0 %v441, 124
    %v770 = vpop.permute.xlu0 %769
    %771 = vrot.lane.b32.xlu0 %v442, 124
    %v772 = vpop.permute.xlu0 %771
    %v773 = vsel %vm352, %v770, %v772
    %v774 = vsel %vm352, %v772, %v770
    %s775 = scalar_lea.vmem %s1, 72
    %v776 = vld [vmem:[%s775] sm:$0xff]
    %v778 = vsel %vm29, %v776, 0
    %780 = vmatprep.subr.mxu0 0.0
    %781 = vmatpush1.msra.mxu0 0.0
    %782 = vmatprep.subr.mxu0 0.0
    %783 = vmatpush1.msra.mxu0 0.0
    %784 = vmatprep.subr.mxu0 0.0
    %785 = vmatpush1.msra.mxu0 0.0
    %786 = vmatprep.subr.mxu0 0.0
    %787 = vmatpush1.msra.mxu0 0.0
    %788 = vmatprep.subr.mxu0 0.0
    %789 = vmatpush1.msra.mxu0 0.0
    %790 = vmatprep.subr.mxu0 0.0
    %791 = vmatpush1.msra.mxu0 0.0
    %792 = vmatprep.subr.mxu0 0.0
    %793 = vmatpush1.msra.mxu0 0.0
    %794 = vmatprep.subr.mxu0 0.0
    %795 = vmatpush1.msra.mxu0 0.0
    %796 = vmatprep.subr.mxu0 0.0
    %797 = vmatpush1.msra.mxu0 0.0
    %798 = vmatprep.subr.mxu0 0.0
    %799 = vmatpush1.msra.mxu0 0.0
    %800 = vmatprep.subr.mxu0 0.0
    %801 = vmatpush1.msra.mxu0 0.0
    %802 = vmatprep.subr.mxu0 0.0
    %803 = vmatpush1.msra.mxu0 0.0
    %804 = vmatprep.subr.mxu0 0.0
    %805 = vmatpush1.msra.mxu0 0.0
    %806 = vmatprep.subr.mxu0 0.0
    %807 = vmatpush1.msra.mxu0 0.0
    %808 = vmatprep.subr.mxu0 0.0
    %809 = vmatpush1.msra.mxu0 0.0
    %810 = vmatprep.subr.mxu0 %v774
    %811 = vmatpush1.msra.mxu0 %v773
    %812 = vmatprep.subr.mxu0 0.0
    %813 = vmatpush2.msra.mxu0 0.0
    %814 = vmatprep.subr.mxu0 0.0
    %815 = vmatpush2.msra.mxu0 0.0
    %816 = vmatprep.subr.mxu0 0.0
    %817 = vmatpush2.msra.mxu0 0.0
    %818 = vmatprep.subr.mxu0 0.0
    %819 = vmatpush2.msra.mxu0 0.0
    %820 = vmatprep.subr.mxu0 0.0
    %821 = vmatpush2.msra.mxu0 0.0
    %822 = vmatprep.subr.mxu0 0.0
    %823 = vmatpush2.msra.mxu0 0.0
    %824 = vmatprep.subr.mxu0 0.0
    %825 = vmatpush2.msra.mxu0 0.0
    %826 = vmatprep.subr.mxu0 0.0
    %827 = vmatpush2.msra.mxu0 0.0
    %828 = vmatprep.subr.mxu0 0.0
    %829 = vmatpush2.msra.mxu0 0.0
    %830 = vmatprep.subr.mxu0 0.0
    %831 = vmatpush2.msra.mxu0 0.0
    %832 = vmatprep.subr.mxu0 0.0
    %833 = vmatpush2.msra.mxu0 0.0
    %834 = vmatprep.subr.mxu0 0.0
    %835 = vmatpush2.msra.mxu0 0.0
    %836 = vmatprep.subr.mxu0 0.0
    %837 = vmatpush2.msra.mxu0 0.0
    %838 = vmatprep.subr.mxu0 0.0
    %839 = vmatpush2.msra.mxu0 0.0
    %840 = vmatprep.subr.mxu0 0.0
    %841 = vmatpush2.msra.mxu0 0.0
    %842 = vmatprep.subr.mxu0 0.0
    %843 = vmatpush2.msra.mxu0 0.0
    %844 = vmatprep.mubr.f32.mxu0 0.0
    %845 = vmatmul.mubr.f32.gmra.mxu0 %v778
    %v846 = vpop.f32.mrf.mxu0
    %v847 = vadd.f32 0.0, %v846
    %v848 = vpop.f32.mrf.mxu0
    %v849 = vadd.f32 0.0, %v848
    %850 = vdwg.mxu0
    %v851 = vadd.f32 %v767, %v847
    %v852 = vadd.f32 %v768, %v849
    %s853 = scalar_lea.vmem %s2, 8
    %v854 = vld [vmem:[%s853] sm:$0xff]
    %856 = vset.pattern.permute.xlu0 0
    %857 = vperm.xlu0 %856, %v854
    %v858 = vpop.permute.xlu0 %857
    %v860 = vadd.f32 %v851, %v858
    %v861 = vadd.f32 %v852, %v858
    %862 = vst [vmem:[#allocation2] sm:$0xff] %v860
    %863 = vst [vmem:[#allocation2 + $0x8] sm:$0xff] %v861
    // Predicated region
    $region14: #{tpu_custom_call.1} parent=1 // pred_check
      _
    $region15: #{tpu_custom_call.1} parent=1 // pred_check_branch
      %865 = sbr.rel (0) target = $region17
    $region16: #{tpu_custom_call.1} parent=1 // pred_region
      %s867 = ssub.s32 256, 256
      %868 = vsyncadd [#allocation3], %s867
      %s870 = sshll.u32 [#allocation2], 4
      %s871 = int_to_ptr.vmem [resolvable:$true] %s870
      %873 = dma.vmem_to_hbm [thread:$0]  %s871, 256, %s3, [#allocation3]
    $region17: #{tpu_custom_call.1} parent=1 // pred_fallthru
      _
    // Predicated region
    $region18: #{tpu_custom_call.1} parent=1 // pred_check
      _
    $region19: #{tpu_custom_call.1} parent=1 // pred_check_branch
      %875 = sbr.rel (0) target = $region21
    $region20: #{tpu_custom_call.1} parent=1 // pred_region
      %876 = dma.done [#allocation3], 256
    $region21: #{tpu_custom_call.1} parent=1 // pred_fallthru
      _
    %877 = vsyncpa [#allocation3], 1

</llo_original>
